<compile_context>
chip_gen: v6e
topology: v6e:2x2x1
jax: 0.10.0
libtpu: 0.0.40
codegen_flags: <defaults>
</compile_context>

<pallas_src>
import functools

import jax
import jax.numpy as jnp
import numpy as np
from jax.experimental import pallas as pl
from jax.experimental.pallas import tpu as pltpu


def _round_up(v, m):
    return (v + m - 1) // m * m


def _vmem_budget_bytes():
    """Generation-aware scoped-VMEM budget (~75% of physical, with headroom)."""
    try:
        cap = int(pltpu.get_tpu_info().vmem_capacity_bytes)
    except Exception:
        cap = 64 << 20  # conservative default (v7x per-TensorCore capacity)
    return max(16 << 20, cap * 3 // 4)


# ---------------------------------------------------------------------------
# Kernel bodies
# ---------------------------------------------------------------------------
def _make_fused_kernel(has_x):
    """grid = (batch_blocks,). msgs_ref holds the FULL [K, B_blk, H] stack."""

    def kernel(*refs):
        if has_x:
            msgs_ref, x_ref, wm_ref, wx_ref, b_ref, o_ref = refs
        else:
            msgs_ref, wm_ref, b_ref, o_ref = refs

        # Bag-of-words sum over the message stack, in f32 (matches PyTorch).
        m = jnp.sum(msgs_ref[...].astype(jnp.float32), axis=0)

        # concat(m, x) @ W.T  ==  m @ W_m + x @ W_x  (weights pre-split/transposed)
        acc = jnp.dot(m.astype(wm_ref.dtype), wm_ref[...],
                      preferred_element_type=jnp.float32)
        if has_x:
            acc = acc + jnp.dot(x_ref[...].astype(wx_ref.dtype), wx_ref[...],
                                preferred_element_type=jnp.float32)
        acc = acc + b_ref[...]
        o_ref[...] = jnp.maximum(acc, 0.0).astype(o_ref.dtype)

    return kernel


def _make_stream_kernel(has_x):
    """grid = (batch_blocks, K). One message slice per k step, f32 accumulator."""

    def kernel(*refs):
        if has_x:
            msgs_ref, x_ref, wm_ref, wx_ref, b_ref, o_ref, m_acc = refs
        else:
            msgs_ref, wm_ref, b_ref, o_ref, m_acc = refs

        k = pl.program_id(1)

        @pl.when(k == 0)
        def _init():
            m_acc[...] = jnp.zeros_like(m_acc)

        m_acc[...] += msgs_ref[...].astype(jnp.float32)

        @pl.when(k == pl.num_programs(1) - 1)
        def _finalize():
            acc = jnp.dot(m_acc[...].astype(wm_ref.dtype), wm_ref[...],
                          preferred_element_type=jnp.float32)
            if has_x:
                acc = acc + jnp.dot(x_ref[...].astype(wx_ref.dtype), wx_ref[...],
                                    preferred_element_type=jnp.float32)
            acc = acc + b_ref[...]
            o_ref[...] = jnp.maximum(acc, 0.0).astype(o_ref.dtype)

    return kernel


# ---------------------------------------------------------------------------
# Parameter prep (hoisted out of the per-call forward path)
# ---------------------------------------------------------------------------
def prepare_params(weight, bias, param_dtype=jnp.float32):
    """weight: [H, 2H] (nn.Linear(2H, H).weight layout), bias: [H].

    Splits/transposes once so the kernel never materializes the concat:
        concat(m, x) @ W.T == m @ W_m + x @ W_x.
    param_dtype=jnp.bfloat16 halves weight HBM/VMEM traffic; the message sum
    and the matmul accumulation stay in f32 inside the kernel.
    """
    H = weight.shape[0]
    assert weight.shape == (H, 2 * H) and bias.shape == (H,)
    w_m = jnp.transpose(weight[:, :H]).astype(param_dtype)   # [H, H]
    w_x = jnp.transpose(weight[:, H:]).astype(param_dtype)   # [H, H]
    b2d = bias.reshape(1, H).astype(jnp.float32)              # [1, H]
    return w_m, w_x, b2d


# ---------------------------------------------------------------------------
# Forward
# ---------------------------------------------------------------------------
@functools.partial(jax.jit, static_argnames=("has_x",))
def _forward_impl(msgs, x, w_m, w_x, b2d, *, has_x):
    K, B, H = msgs.shape
    assert w_m.shape == (H, H)

    m_item = msgs.dtype.itemsize
    x_item = x.dtype.itemsize if has_x else 0
    p_item = w_m.dtype.itemsize
    out_dtype = jnp.promote_types(msgs.dtype, w_m.dtype)
    out_item = jnp.dtype(out_dtype).itemsize

    budget = _vmem_budget_bytes()

    # Weights / bias: constant index_map -> single-buffered, resident all grid.
    n_w = 2 if has_x else 1
    resident = n_w * H * H * p_item + H * b2d.dtype.itemsize
    if resident > budget // 2:
        # TODO(synk): tile the contraction / output dims of the weight for very
        # large h_dims instead of keeping it fully resident in VMEM.
        raise ValueError(
            f"h_dims={H} too large for resident-weight kernel "
            f"(weights ~{resident >> 20} MiB vs VMEM budget {budget >> 20} MiB)")

    target_tile = 4 << 20  # per-step msgs-tile target (>=~2 MiB ~ 85%+ of HBM roofline)

    # Fused (single grid axis) path whenever the full K stack for even a minimal
    # 8-row batch tile fits comfortably; otherwise stream one message per step.
    use_fused = K * 8 * H * m_item <= min(8 << 20, budget // 8)

    if use_fused:
        bytes_per_row = K * H * m_item
        vmem_per_row = 2 * K * H * m_item + 2 * H * x_item + 2 * H * out_item
    else:
        bytes_per_row = H * m_item
        vmem_per_row = (2 * H * m_item + 2 * H * x_item + 2 * H * out_item
                        + 4 * H)  # + f32 accumulator scratch

    rows_target = max(8, (target_tile // max(1, bytes_per_row)) // 8 * 8)
    rows_vmem = max(8, ((budget - resident - (2 << 20)) // max(1, vmem_per_row)) // 8 * 8)
    B_blk = min(rows_target, rows_vmem, _round_up(B, 8))
    if B >= 16:
        # Keep >= 2 batch blocks so a 2-TensorCore chip (v7x) can split the
        # "parallel" batch axis across both cores.
        B_blk = min(B_blk, _round_up(pl.cdiv(B, 2), 8))
    B_blk = max(8, B_blk)
    nb = pl.cdiv(B, B_blk)   # ragged last block handled by Pallas (no jnp.pad!)

    vmem_limit = int(min(budget,
                         max(resident + B_blk * vmem_per_row + (2 << 20), 16 << 20)))

    flops = 2 * B * H * H * n_w + K * B * H
    bytes_accessed = (K * B * H * m_item + B * H * x_item + resident
                      + B * H * out_item)
    cost = pl.CostEstimate(flops=int(flops), transcendentals=0,
                           bytes_accessed=int(bytes_accessed))

    def w_spec(idx_map):
        return pl.BlockSpec((H, H), idx_map, pipeline_mode=pl.Buffered(1))

    def b_spec(idx_map):
        return pl.BlockSpec((1, H), idx_map, pipeline_mode=pl.Buffered(1))

    if use_fused:
        in_specs = [pl.BlockSpec((K, B_blk, H), lambda b: (0, b, 0))]
        args = [msgs]
        if has_x:
            in_specs.append(pl.BlockSpec((B_blk, H), lambda b: (b, 0)))
            args.append(x)
        in_specs.append(w_spec(lambda b: (0, 0))); args.append(w_m)
        if has_x:
            in_specs.append(w_spec(lambda b: (0, 0))); args.append(w_x)
        in_specs.append(b_spec(lambda b: (0, 0))); args.append(b2d)

        return pl.pallas_call(
            _make_fused_kernel(has_x),
            out_shape=jax.ShapeDtypeStruct((B, H), out_dtype),
            grid_spec=pltpu.PrefetchScalarGridSpec(
                num_scalar_prefetch=0,
                grid=(nb,),
                in_specs=in_specs,
                out_specs=pl.BlockSpec((B_blk, H), lambda b: (b, 0)),
            ),
            compiler_params=pltpu.CompilerParams(
                dimension_semantics=("parallel",),
                vmem_limit_bytes=vmem_limit),
            cost_estimate=cost,
        )(*args)

    # Streaming path for large K: one [B_blk, H] message slice per k step.
    in_specs = [pl.BlockSpec((pl.Squeezed(), B_blk, H), lambda b, k: (k, b, 0))]
    args = [msgs]
    if has_x:
        in_specs.append(pl.BlockSpec((B_blk, H), lambda b, k: (b, 0)))
        args.append(x)
    in_specs.append(w_spec(lambda b, k: (0, 0))); args.append(w_m)
    if has_x:
        in_specs.append(w_spec(lambda b, k: (0, 0))); args.append(w_x)
    in_specs.append(b_spec(lambda b, k: (0, 0))); args.append(b2d)

    return pl.pallas_call(
        _make_stream_kernel(has_x),
        out_shape=jax.ShapeDtypeStruct((B, H), out_dtype),
        grid_spec=pltpu.PrefetchScalarGridSpec(
            num_scalar_prefetch=0,
            grid=(nb, K),
            in_specs=in_specs,
            out_specs=pl.BlockSpec((B_blk, H), lambda b, k: (b, 0)),
            scratch_shapes=[pltpu.VMEM((B_blk, H), jnp.float32)],
        ),
        compiler_params=pltpu.CompilerParams(
            dimension_semantics=("parallel", "arbitrary"),
            vmem_limit_bytes=vmem_limit),
        cost_estimate=cost,
    )(*args)


def default_update_forward(x, msgs, params):
    """
    x      : [B, H] array or None (PyTorch uses zeros_like(msgs[0]) -> zero contribution)
    msgs   : [K, B, H] stacked incoming messages
    params : output of prepare_params(weight, bias)
    returns: [B, H]
    """
    w_m, w_x, b2d = params
    if msgs.shape[0] == 0:
        # Isolated node (no incoming messages): m == 0. Keep one zero message so
        # the kernel path stays uniform (negligible extra traffic).
        msgs = jnp.zeros((1,) + tuple(msgs.shape[1:]), dtype=msgs.dtype)
    has_x = x is not None
    if not has_x:
        x = jnp.zeros((1, 1), dtype=msgs.dtype)  # unused dummy; x path is skipped
    return _forward_impl(msgs, x, w_m, w_x, b2d, has_x=has_x)


# ---------------------------------------------------------------------------
# Demo / self-test
# ---------------------------------------------------------------------------
if __name__ == "__main__":
    H, B, K = 32, 8, 3   # small deterministic problem: h_dims=32, batch=8, 3 messages

    key = jax.random.PRNGKey(0)
    k_msgs, k_x, k_w, k_b = jax.random.split(key, 4)

    msgs = jax.random.normal(k_msgs, (K, B, H), dtype=jnp.float32)
    x = jax.random.normal(k_x, (B, H), dtype=jnp.float32)

    # nn.Linear(2H, H) default init: U(-1/sqrt(fan_in), 1/sqrt(fan_in)), fan_in = 2H.
    bound = 1.0 / np.sqrt(2 * H)
    weight = jax.random.uniform(k_w, (H, 2 * H), minval=-bound, maxval=bound,
                                dtype=jnp.float32)
    bias = jax.random.uniform(k_b, (H,), minval=-bound, maxval=bound,
                              dtype=jnp.float32)

    # Pure-JAX reference of the exact PyTorch semantics.
    m_ref = jnp.sum(msgs, axis=0)
    ref = jnp.maximum(jnp.concatenate([m_ref, x], axis=1) @ weight.T + bias, 0.0)
    ref_nox = jnp.maximum(m_ref @ weight[:, :H].T + bias, 0.0)

    # f32 path.
    params = prepare_params(weight, bias, jnp.float32)
    out = jax.block_until_ready(default_update_forward(x, msgs, params))
    np.testing.assert_allclose(np.asarray(out), np.asarray(ref),
                               rtol=1e-5, atol=1e-5)

    # x = None path (specialized: no x DMA, no second dot).
    out_nox = jax.block_until_ready(default_update_forward(None, msgs, params))
    np.testing.assert_allclose(np.asarray(out_nox), np.asarray(ref_nox),
                               rtol=1e-5, atol=1e-5)

    # bf16-weight path: msgs stay f32 (no wrapper cast / extra HBM pass),
    # the bag-of-words sum stays f32, only the matmul operands are bf16.
    params16 = prepare_params(weight, bias, jnp.bfloat16)
    out16 = jax.block_until_ready(default_update_forward(x, msgs, params16))
    np.testing.assert_allclose(np.asarray(out16), np.asarray(ref),
                               rtol=5e-2, atol=5e-2)

    print("KERNEL_OK")
</pallas_src>

<mosaic_0001>
module attributes {stable_mosaic.version = 11 : i64} {
  func.func @kernel(%arg0: i32, %arg1: memref<3x8x32xf32, #tpu.memory_space<vmem>>, %arg2: memref<8x32xf32, #tpu.memory_space<vmem>>, %arg3: memref<32x32xf32, #tpu.memory_space<vmem>>, %arg4: memref<32x32xf32, #tpu.memory_space<vmem>>, %arg5: memref<1x32xf32, #tpu.memory_space<vmem>>, %arg6: memref<8x32xf32, #tpu.memory_space<vmem>>) attributes {dimension_semantics = [#tpu.dimension_semantics<parallel>], iteration_bounds = array<i64: 1>, scalar_prefetch = 0 : i64, scratch_operands = 0 : i64, tpu.core_type = #tpu.core_type<tc>, window_params = [{transform_indices = @transform_0, window_bounds = array<i64: 3, 8, 32>}, {transform_indices = @transform_1, window_bounds = array<i64: 8, 32>}, {pipeline_mode = #tpu.pipeline_mode<synchronous>, transform_indices = @transform_2, window_bounds = array<i64: 32, 32>}, {pipeline_mode = #tpu.pipeline_mode<synchronous>, transform_indices = @transform_3, window_bounds = array<i64: 32, 32>}, {pipeline_mode = #tpu.pipeline_mode<synchronous>, transform_indices = @transform_4, window_bounds = array<i64: 1, 32>}, {transform_indices = @transform_5, window_bounds = array<i64: 8, 32>}]} {
    %c0 = arith.constant 0 : index
    %c0_0 = arith.constant 0 : index
    %c0_1 = arith.constant 0 : index
    %0 = vector.load %arg1[%c0, %c0_0, %c0_1] : memref<3x8x32xf32, #tpu.memory_space<vmem>>, vector<3x8x32xf32>
    %cst = arith.constant dense<0.000000e+00> : vector<8x32xf32>
    %1 = vector.multi_reduction <add>, %0, %cst [0] : vector<3x8x32xf32> to vector<8x32xf32>
    %c0_2 = arith.constant 0 : index
    %c0_3 = arith.constant 0 : index
    %2 = vector.load %arg3[%c0_2, %c0_3] : memref<32x32xf32, #tpu.memory_space<vmem>>, vector<32x32xf32>
    %cst_4 = arith.constant dense<0.000000e+00> : vector<8x32xf32>
    %3 = tpu.matmul %1, %2, %cst_4 {dimension_numbers = #tpu.dot_dimension_numbers<[1], [0], [0], [1], [0, 0, 1, 1], [], []>} : vector<8x32xf32>, vector<32x32xf32>, vector<8x32xf32> -> vector<8x32xf32>
    %c0_5 = arith.constant 0 : index
    %c0_6 = arith.constant 0 : index
    %4 = vector.load %arg2[%c0_5, %c0_6] : memref<8x32xf32, #tpu.memory_space<vmem>>, vector<8x32xf32>
    %c0_7 = arith.constant 0 : index
    %c0_8 = arith.constant 0 : index
    %5 = vector.load %arg4[%c0_7, %c0_8] : memref<32x32xf32, #tpu.memory_space<vmem>>, vector<32x32xf32>
    %cst_9 = arith.constant dense<0.000000e+00> : vector<8x32xf32>
    %6 = tpu.matmul %4, %5, %cst_9 {dimension_numbers = #tpu.dot_dimension_numbers<[1], [0], [0], [1], [0, 0, 1, 1], [], []>} : vector<8x32xf32>, vector<32x32xf32>, vector<8x32xf32> -> vector<8x32xf32>
    %7 = arith.addf %3, %6 : vector<8x32xf32>
    %c0_10 = arith.constant 0 : index
    %c0_11 = arith.constant 0 : index
    %8 = vector.load %arg5[%c0_10, %c0_11] : memref<1x32xf32, #tpu.memory_space<vmem>>, vector<1x32xf32>
    %9 = vector.broadcast %8 : vector<1x32xf32> to vector<8x32xf32>
    %10 = arith.addf %7, %9 : vector<8x32xf32>
    %cst_12 = arith.constant 0.000000e+00 : f32
    %11 = vector.broadcast %cst_12 : f32 to vector<8x32xf32>
    %12 = arith.maximumf %10, %11 : vector<8x32xf32>
    %c0_13 = arith.constant 0 : index
    %c0_14 = arith.constant 0 : index
    %13 = vector.load %arg6[%c0_13, %c0_14] : memref<8x32xf32, #tpu.memory_space<vmem>>, vector<8x32xf32>
    tpu.vector_store %arg6[%c0_13, %c0_14], %12 {strides = array<i32>} : memref<8x32xf32, #tpu.memory_space<vmem>>, vector<8x32xf32>,
    return
  }
  func.func @transform_0(%arg0: i32) -> (i32, i32, i32) {
    %c0_i32 = arith.constant 0 : i32
    %c0_i32_0 = arith.constant 0 : i32
    %c0_i32_1 = arith.constant 0 : i32
    return %c0_i32, %arg0, %c0_i32_0 : i32, i32, i32
  }
  func.func @transform_1(%arg0: i32) -> (i32, i32) {
    %c0_i32 = arith.constant 0 : i32
    %c0_i32_0 = arith.constant 0 : i32
    return %arg0, %c0_i32 : i32, i32
  }
  func.func @transform_2(%arg0: i32) -> (i32, i32) {
    %c0_i32 = arith.constant 0 : i32
    %c0_i32_0 = arith.constant 0 : i32
    %c0_i32_1 = arith.constant 0 : i32
    return %c0_i32, %c0_i32_0 : i32, i32
  }
  func.func @transform_3(%arg0: i32) -> (i32, i32) {
    %c0_i32 = arith.constant 0 : i32
    %c0_i32_0 = arith.constant 0 : i32
    %c0_i32_1 = arith.constant 0 : i32
    return %c0_i32, %c0_i32_0 : i32, i32
  }
  func.func @transform_4(%arg0: i32) -> (i32, i32) {
    %c0_i32 = arith.constant 0 : i32
    %c0_i32_0 = arith.constant 0 : i32
    %c0_i32_1 = arith.constant 0 : i32
    return %c0_i32, %c0_i32_0 : i32, i32
  }
  func.func @transform_5(%arg0: i32) -> (i32, i32) {
    %c0_i32 = arith.constant 0 : i32
    %c0_i32_0 = arith.constant 0 : i32
    return %arg0, %c0_i32 : i32, i32
  }
}

</mosaic_0001>

<llo_original>
// kernel: _forward_impl.1
$region0: #{_forward_impl.1}
  #allocation0 [shape = 'u32[]', space=smem, size = 0x4, offset = 0x4, fixed_abs, tag = 'smem constant byte address 0x4 - core index']
  #allocation1 [shape = 'u32[144,128]{1,0:T(1,128)}', space=vmem, size = 0x12000, scoped, tag = 'internal scratch']
  %s0 = inlined_call_operand.hbm [shape: f32[3,8,32], index: 0, kind: input, shape index: {}]
  %s1 = inlined_call_operand.hbm [shape: f32[8,32], index: 1, kind: input, shape index: {}]
  %s2 = inlined_call_operand.hbm [shape: f32[32,32], index: 2, kind: input, shape index: {}]
  %s3 = inlined_call_operand.hbm [shape: f32[32,32], index: 3, kind: input, shape index: {}]
  %s4 = inlined_call_operand.vmem [shape: f32[1,32], index: 4, kind: input, shape index: {}]
  %s5 = inlined_call_operand.hbm [shape: f32[8,32], index: 5, kind: output, shape index: {}]
  %s6 = sld [smem:[#allocation0]]
  $region46: #{_forward_impl.1} parent=0
    _
  %s8 = ssub.s32 1, %s6
  %s9 = scalar_select 0, %s8, %s6
  $region1: #{_forward_impl.1} parent=0
    #allocation2 [shape = 'u8[12288]{0}', space=vmem, size = 0x3000, scoped, tag = 'input window, operand 0, single buffered']
    #allocation3 [shape = 's32[1]{0}', space=sflag, size = 0x4, scoped, tag = 'scoped memory for _forward_impl.1']
    #allocation4 [shape = 's32[1]{0}', space=sflag, size = 0x4, scoped, tag = 'scoped memory for _forward_impl.1']
    #allocation5 [shape = 'u8[4096]{0}', space=vmem, size = 0x1000, scoped, tag = 'input window, operand 1, single buffered']
    #allocation6 [shape = 's32[1]{0}', space=sflag, size = 0x4, scoped, tag = 'scoped memory for _forward_impl.1']
    #allocation7 [shape = 'u8[16384]{0}', space=vmem, size = 0x4000, scoped, tag = 'input window, operand 2, single buffered']
    #allocation8 [shape = 'u8[16384]{0}', space=vmem, size = 0x4000, scoped, tag = 'input window, operand 3, single buffered']
    #allocation9 [shape = 's32[1]{0}', space=sflag, size = 0x4, scoped, tag = 'scoped memory for _forward_impl.1']
    #allocation10 [shape = 'u8[4096]{0}', space=vmem, size = 0x1000, scoped, tag = 'output window, operand 0, single buffered']
    %10 = vsyncpa [#allocation3], 0
    %11 = vsyncpa [#allocation6], 0
    %12 = vsyncpa [#allocation9], 0
    %13 = vsyncpa [#allocation4], 0
    // Predicated region
    $region2: #{_forward_impl.1} parent=1 // pred_check
      _
    $region3: #{_forward_impl.1} parent=1 // pred_check_branch
      %15 = sbr.rel (0) target = $region5
    $region4: #{_forward_impl.1} parent=1 // pred_region
      %s17 = ssub.s32 384, 384
      %18 = vsyncadd [#allocation3], %s17
      %s19 = sshll.u32 [#allocation2], 4
      %s20 = int_to_ptr.vmem [resolvable:$true] %s19
      %25 = dma.hbm_to_vmem [thread:$0]  %s0, 384, %s20, [#allocation3], 128, 128, 8
    $region5: #{_forward_impl.1} parent=1 // pred_fallthru
      _
    // Predicated region
    $region6: #{_forward_impl.1} parent=1 // pred_check
      _
    $region7: #{_forward_impl.1} parent=1 // pred_check_branch
      %27 = sbr.rel (0) target = $region9
    $region8: #{_forward_impl.1} parent=1 // pred_region
      %s29 = ssub.s32 128, 128
      %30 = vsyncadd [#allocation6], %s29
      %s32 = sshll.u32 [#allocation5], 4
      %s33 = int_to_ptr.vmem [resolvable:$true] %s32
      %35 = dma.hbm_to_vmem [thread:$0]  %s1, 128, %s33, [#allocation6]
    $region9: #{_forward_impl.1} parent=1 // pred_fallthru
      _
    // Predicated region
    $region10: #{_forward_impl.1} parent=1 // pred_check
      _
    $region11: #{_forward_impl.1} parent=1 // pred_check_branch
      %37 = sbr.rel (0) target = $region13
    $region12: #{_forward_impl.1} parent=1 // pred_region
      %s39 = ssub.s32 512, 512
      %40 = vsyncadd [#allocation6], %s39
      %s41 = sshll.u32 [#allocation7], 4
      %s42 = int_to_ptr.vmem [resolvable:$true] %s41
      %47 = dma.hbm_to_vmem [thread:$0]  %s2, 512, %s42, [#allocation6], 128, 128, 8
    $region13: #{_forward_impl.1} parent=1 // pred_fallthru
      _
    // Predicated region
    $region14: #{_forward_impl.1} parent=1 // pred_check
      _
    $region15: #{_forward_impl.1} parent=1 // pred_check_branch
      %49 = sbr.rel (0) target = $region17
    $region16: #{_forward_impl.1} parent=1 // pred_region
      %s51 = ssub.s32 512, 512
      %52 = vsyncadd [#allocation9], %s51
      %s53 = sshll.u32 [#allocation8], 4
      %s54 = int_to_ptr.vmem [resolvable:$true] %s53
      %59 = dma.hbm_to_vmem [thread:$0]  %s3, 512, %s54, [#allocation9], 128, 128, 8
    $region17: #{_forward_impl.1} parent=1 // pred_fallthru
      _
    // Predicated region
    $region18: #{_forward_impl.1} parent=1 // pred_check
      _
    $region19: #{_forward_impl.1} parent=1 // pred_check_branch
      %61 = sbr.rel (0) target = $region21
    $region20: #{_forward_impl.1} parent=1 // pred_region
      _
    $region21: #{_forward_impl.1} parent=1 // pred_fallthru
      _
    // Predicated region
    $region22: #{_forward_impl.1} parent=1 // pred_check
      _
    $region23: #{_forward_impl.1} parent=1 // pred_check_branch
      %63 = sbr.rel (0) target = $region25
    $region24: #{_forward_impl.1} parent=1 // pred_region
      %64 = dma.done [#allocation3], 384
    $region25: #{_forward_impl.1} parent=1 // pred_fallthru
      _
    // Predicated region
    $region26: #{_forward_impl.1} parent=1 // pred_check
      _
    $region27: #{_forward_impl.1} parent=1 // pred_check_branch
      %66 = sbr.rel (0) target = $region29
    $region28: #{_forward_impl.1} parent=1 // pred_region
      %67 = dma.done [#allocation6], 128
    $region29: #{_forward_impl.1} parent=1 // pred_fallthru
      _
    // Predicated region
    $region30: #{_forward_impl.1} parent=1 // pred_check
      _
    $region31: #{_forward_impl.1} parent=1 // pred_check_branch
      %69 = sbr.rel (0) target = $region33
    $region32: #{_forward_impl.1} parent=1 // pred_region
      %70 = dma.done [#allocation6], 512
    $region33: #{_forward_impl.1} parent=1 // pred_fallthru
      _
    // Predicated region
    $region34: #{_forward_impl.1} parent=1 // pred_check
      _
    $region35: #{_forward_impl.1} parent=1 // pred_check_branch
      %72 = sbr.rel (0) target = $region37
    $region36: #{_forward_impl.1} parent=1 // pred_region
      %73 = dma.done [#allocation9], 512
    $region37: #{_forward_impl.1} parent=1 // pred_fallthru
      _
    %v74 = vld [vmem:[#allocation2] sm:$0xff]
    %v75 = vld [vmem:[#allocation2 + $0x8] sm:$0xff]
    %v76 = vld [vmem:[#allocation2 + $0x10] sm:$0xff]
    %vm77 = vcmask 261120
    %v78 = vsel %vm77, %v74, 0.0
    %v79 = vsel %vm77, %v75, 0.0
    %v80 = vadd.f32 %v78, %v79
    %v81 = vsel %vm77, %v76, 0.0
    %v82 = vadd.f32 %v80, %v81
    %v83 = vld [vmem:[#allocation7] sm:$0xff]
    %v84 = vld [vmem:[#allocation7 + $0x8] sm:$0xff]
    %v85 = vld [vmem:[#allocation7 + $0x10] sm:$0xff]
    %v86 = vld [vmem:[#allocation7 + $0x18] sm:$0xff]
    %v87 = vld [vmem:[#allocation5] sm:$0xff]
    %v88 = vld [vmem:[#allocation8] sm:$0xff]
    %v89 = vld [vmem:[#allocation8 + $0x8] sm:$0xff]
    %v90 = vld [vmem:[#allocation8 + $0x10] sm:$0xff]
    %v91 = vld [vmem:[#allocation8 + $0x18] sm:$0xff]
    %v93 = vsel %vm77, %v87, 0
    %95 = vmatprep.subr.mxu0 0.0
    %96 = vmatpush1.msra.mxu0 0.0
    %97 = vmatprep.subr.mxu0 0.0
    %98 = vmatpush1.msra.mxu0 0.0
    %99 = vmatprep.subr.mxu0 0.0
    %100 = vmatpush1.msra.mxu0 0.0
    %101 = vmatprep.subr.mxu0 0.0
    %102 = vmatpush1.msra.mxu0 0.0
    %103 = vmatprep.subr.mxu0 0.0
    %104 = vmatpush1.msra.mxu0 0.0
    %105 = vmatprep.subr.mxu0 0.0
    %106 = vmatpush1.msra.mxu0 0.0
    %107 = vmatprep.subr.mxu0 0.0
    %108 = vmatpush1.msra.mxu0 0.0
    %109 = vmatprep.subr.mxu0 0.0
    %110 = vmatpush1.msra.mxu0 0.0
    %111 = vmatprep.subr.mxu0 0.0
    %112 = vmatpush1.msra.mxu0 0.0
    %113 = vmatprep.subr.mxu0 0.0
    %114 = vmatpush1.msra.mxu0 0.0
    %115 = vmatprep.subr.mxu0 0.0
    %116 = vmatpush1.msra.mxu0 0.0
    %117 = vmatprep.subr.mxu0 0.0
    %118 = vmatpush1.msra.mxu0 0.0
    %119 = vmatprep.subr.mxu0 0.0
    %120 = vmatpush1.msra.mxu0 %v91
    %121 = vmatprep.subr.mxu0 0.0
    %122 = vmatpush1.msra.mxu0 %v90
    %123 = vmatprep.subr.mxu0 0.0
    %124 = vmatpush1.msra.mxu0 %v89
    %125 = vmatprep.subr.mxu0 0.0
    %126 = vmatpush1.msra.mxu0 %v88
    %127 = vmatprep.subr.mxu0 0.0
    %128 = vmatpush2.msra.mxu0 0.0
    %129 = vmatprep.subr.mxu0 0.0
    %130 = vmatpush2.msra.mxu0 0.0
    %131 = vmatprep.subr.mxu0 0.0
    %132 = vmatpush2.msra.mxu0 0.0
    %133 = vmatprep.subr.mxu0 0.0
    %134 = vmatpush2.msra.mxu0 0.0
    %135 = vmatprep.subr.mxu0 0.0
    %136 = vmatpush2.msra.mxu0 0.0
    %137 = vmatprep.subr.mxu0 0.0
    %138 = vmatpush2.msra.mxu0 0.0
    %139 = vmatprep.subr.mxu0 0.0
    %140 = vmatpush2.msra.mxu0 0.0
    %141 = vmatprep.subr.mxu0 0.0
    %142 = vmatpush2.msra.mxu0 0.0
    %143 = vmatprep.subr.mxu0 0.0
    %144 = vmatpush2.msra.mxu0 0.0
    %145 = vmatprep.subr.mxu0 0.0
    %146 = vmatpush2.msra.mxu0 0.0
    %147 = vmatprep.subr.mxu0 0.0
    %148 = vmatpush2.msra.mxu0 0.0
    %149 = vmatprep.subr.mxu0 0.0
    %150 = vmatpush2.msra.mxu0 0.0
    %151 = vmatprep.subr.mxu0 0.0
    %152 = vmatpush2.msra.mxu0 0.0
    %153 = vmatprep.subr.mxu0 0.0
    %154 = vmatpush2.msra.mxu0 0.0
    %155 = vmatprep.subr.mxu0 0.0
    %156 = vmatpush2.msra.mxu0 0.0
    %157 = vmatprep.subr.mxu0 0.0
    %158 = vmatpush2.msra.mxu0 0.0
    %159 = vmatprep.mubr.f32.mxu0 0.0
    %160 = vmatmul.mubr.f32.gmra.mxu0 %v93
    %v161 = vpop.f32.mrf.mxu0
    %v162 = vadd.f32 0.0, %v161
    %v163 = vpop.f32.mrf.mxu0
    %164 = vdwg.mxu0
    %v166 = vsel %vm77, %v82, 0
    %168 = vmatprep.subr.mxu0 0.0
    %169 = vmatpush1.msra.mxu0 0.0
    %170 = vmatprep.subr.mxu0 0.0
    %171 = vmatpush1.msra.mxu0 0.0
    %172 = vmatprep.subr.mxu0 0.0
    %173 = vmatpush1.msra.mxu0 0.0
    %174 = vmatprep.subr.mxu0 0.0
    %175 = vmatpush1.msra.mxu0 0.0
    %176 = vmatprep.subr.mxu0 0.0
    %177 = vmatpush1.msra.mxu0 0.0
    %178 = vmatprep.subr.mxu0 0.0
    %179 = vmatpush1.msra.mxu0 0.0
    %180 = vmatprep.subr.mxu0 0.0
    %181 = vmatpush1.msra.mxu0 0.0
    %182 = vmatprep.subr.mxu0 0.0
    %183 = vmatpush1.msra.mxu0 0.0
    %184 = vmatprep.subr.mxu0 0.0
    %185 = vmatpush1.msra.mxu0 0.0
    %186 = vmatprep.subr.mxu0 0.0
    %187 = vmatpush1.msra.mxu0 0.0
    %188 = vmatprep.subr.mxu0 0.0
    %189 = vmatpush1.msra.mxu0 0.0
    %190 = vmatprep.subr.mxu0 0.0
    %191 = vmatpush1.msra.mxu0 0.0
    %192 = vmatprep.subr.mxu0 0.0
    %193 = vmatpush1.msra.mxu0 %v86
    %194 = vmatprep.subr.mxu0 0.0
    %195 = vmatpush1.msra.mxu0 %v85
    %196 = vmatprep.subr.mxu0 0.0
    %197 = vmatpush1.msra.mxu0 %v84
    %198 = vmatprep.subr.mxu0 0.0
    %199 = vmatpush1.msra.mxu0 %v83
    %200 = vmatprep.subr.mxu0 0.0
    %201 = vmatpush2.msra.mxu0 0.0
    %202 = vmatprep.subr.mxu0 0.0
    %203 = vmatpush2.msra.mxu0 0.0
    %204 = vmatprep.subr.mxu0 0.0
    %205 = vmatpush2.msra.mxu0 0.0
    %206 = vmatprep.subr.mxu0 0.0
    %207 = vmatpush2.msra.mxu0 0.0
    %208 = vmatprep.subr.mxu0 0.0
    %209 = vmatpush2.msra.mxu0 0.0
    %210 = vmatprep.subr.mxu0 0.0
    %211 = vmatpush2.msra.mxu0 0.0
    %212 = vmatprep.subr.mxu0 0.0
    %213 = vmatpush2.msra.mxu0 0.0
    %214 = vmatprep.subr.mxu0 0.0
    %215 = vmatpush2.msra.mxu0 0.0
    %216 = vmatprep.subr.mxu0 0.0
    %217 = vmatpush2.msra.mxu0 0.0
    %218 = vmatprep.subr.mxu0 0.0
    %219 = vmatpush2.msra.mxu0 0.0
    %220 = vmatprep.subr.mxu0 0.0
    %221 = vmatpush2.msra.mxu0 0.0
    %222 = vmatprep.subr.mxu0 0.0
    %223 = vmatpush2.msra.mxu0 0.0
    %224 = vmatprep.subr.mxu0 0.0
    %225 = vmatpush2.msra.mxu0 0.0
    %226 = vmatprep.subr.mxu0 0.0
    %227 = vmatpush2.msra.mxu0 0.0
    %228 = vmatprep.subr.mxu0 0.0
    %229 = vmatpush2.msra.mxu0 0.0
    %230 = vmatprep.subr.mxu0 0.0
    %231 = vmatpush2.msra.mxu0 0.0
    %232 = vmatprep.mubr.f32.mxu0 0.0
    %233 = vmatmul.mubr.f32.gmra.mxu0 %v166
    %v234 = vpop.f32.mrf.mxu0
    %v235 = vadd.f32 %v162, %v234
    %v236 = vpop.f32.mrf.mxu0
    %237 = vdwg.mxu0
    %v238 = vld [vmem:[%s4] sm:$0x1]
    %v240 = vlaneseq
    %v241 = vshrl.u32 %v240, 7
    %v242 = vsub.s32 0, %v241
    %v243 = vrot.slane %v238, %v242
    %v245 = vadd.f32 %v235, %v243
    %v246 = vmax.f32 %v245, 0.0
    %247 = vst.msk [vmem:[#allocation10] sm:$0xff] %vm77, %v246
    // Predicated region
    $region38: #{_forward_impl.1} parent=1 // pred_check
      _
    $region39: #{_forward_impl.1} parent=1 // pred_check_branch
      %249 = sbr.rel (0) target = $region41
    $region40: #{_forward_impl.1} parent=1 // pred_region
      %s251 = ssub.s32 128, 128
      %252 = vsyncadd [#allocation4], %s251
      %s254 = sshll.u32 [#allocation10], 4
      %s255 = int_to_ptr.vmem [resolvable:$true] %s254
      %257 = dma.vmem_to_hbm [thread:$0]  %s255, 128, %s5, [#allocation4]
    $region41: #{_forward_impl.1} parent=1 // pred_fallthru
      _
    // Predicated region
    $region42: #{_forward_impl.1} parent=1 // pred_check
      _
    $region43: #{_forward_impl.1} parent=1 // pred_check_branch
      %259 = sbr.rel (0) target = $region45
    $region44: #{_forward_impl.1} parent=1 // pred_region
      %260 = dma.done [#allocation4], 128
    $region45: #{_forward_impl.1} parent=1 // pred_fallthru
      _
    %261 = vsyncpa [#allocation3], 1
    %262 = vsyncpa [#allocation6], 1
    %263 = vsyncpa [#allocation9], 1
    %264 = vsyncpa [#allocation4], 1

</llo_original>
